<compile_context>
chip_gen: v5e
topology: v5e:2x2
jax: 0.10.0
libtpu: 0.0.40
codegen_flags: <defaults>
</compile_context>

<pallas_src>
import functools

import jax
import jax.numpy as jnp
from jax import lax
from jax.experimental import pallas as pl
from jax.experimental.pallas import tpu as pltpu


LANE = 128
SUBLANE = 8
GROUP = LANE * SUBLANE            # 1024 elements = one (8,128) f32 vreg
MAX_TILE_ROWS = 8192              # 8192 * 128 * 4B = 4 MiB f32 per input tile
NUM_SPLITS = 2                    # leading "parallel" grid axis (v7x: 2 TCs)
MIN_KERNEL_ELEMS = 1 << 20        # below this, XLA's fused reduction wins


def _svdd_kernel(r2_ref, d_ref, part_ref, sum_acc, hinge_acc, *,
                 n_rows, tile_rows, tiles_per_split, first_ragged_block):
    """Grid: (splits, tiles_per_split); axis 1 is the sequential reduction axis.

    r2_ref    : SMEM (1,)                radius^2 (scalar parameter)
    d_ref     : VMEM (tile_rows, 128)    current tile of distances (native dtype)
    part_ref  : VMEM (1, 2, 8, 128)      per-split raw accumulators [sum, hinge]
    sum_acc   : VMEM (8, 128) f32        running vreg partial of sum(d)
    hinge_acc : VMEM (8, 128) f32        running vreg partial of sum(relu(d-r^2))
    """
    c = pl.program_id(0)
    k = pl.program_id(1)

    @pl.when(k == 0)
    def _init():
        sum_acc[...] = jnp.zeros_like(sum_acc)
        hinge_acc[...] = jnp.zeros_like(hinge_acc)

    r2 = r2_ref[0]

    def accumulate(d):
        # (tile_rows, 128) -> (tile_rows//8, 8, 128): layout-compatible split of
        # the sublane-major dim; sum over axis 0 is pure VPU vreg adds (no XLU).
        d3 = d.reshape(tile_rows // SUBLANE, SUBLANE, LANE)
        sum_acc[...] += jnp.sum(d3, axis=0)
        hinge_acc[...] += jnp.sum(jnp.maximum(d3 - r2, 0.0), axis=0)

    d = d_ref[...].astype(jnp.float32)

    if first_ragged_block is None:
        accumulate(d)
    else:
        blk = c * tiles_per_split + k   # unclamped logical block id

        @pl.when(blk < first_ragged_block)
        def _full():
            accumulate(d)

        @pl.when(blk >= first_ragged_block)
        def _ragged():
            # Mask rows beyond the logical extent (ragged last tile / phantom
            # blocks from the uneven core split). Zeroed rows contribute 0 to
            # both sums because r^2 >= 0.
            row_ids = (blk * tile_rows
                       + lax.broadcasted_iota(jnp.int32, d.shape, 0))
            accumulate(jnp.where(row_ids < n_rows, d, 0.0))

    @pl.when(k == pl.num_programs(1) - 1)
    def _epilogue():
        part_ref[0, 0] = sum_acc[...]
        part_ref[0, 1] = hinge_acc[...]


def _svdd_loss_jnp(d_flat, r2, nu, n_elems):
    d = d_flat.astype(jnp.float32)
    inv_n = jnp.float32(1.0 / n_elems)
    distance_loss = jnp.sum(d) * inv_n
    radius_loss = r2 + jnp.float32(1.0 / nu) * (jnp.sum(jnp.maximum(d - r2, 0.0)) * inv_n)
    return radius_loss + distance_loss


def svdd_loss(distances, radius, nu=0.1, *, min_kernel_elems=MIN_KERNEL_ELEMS):
    """Pallas implementation of SVDDLoss.forward(distances)."""
    d_flat = distances.reshape(-1)           # native dtype; cast per-tile in kernel
    n_elems = d_flat.shape[0]

    r_f = jnp.asarray(radius, jnp.float32).reshape(())
    r2 = r_f * r_f

    # Kernel covers the largest 1024-element-aligned prefix; the <1024-element
    # tail is reduced with O(1) jnp ops (no full-tensor pad copy in HBM).
    n_body = (n_elems // GROUP) * GROUP
    if n_elems < min_kernel_elems or n_body == 0:
        return _svdd_loss_jnp(d_flat, r2, nu, n_elems)

    if n_body != n_elems:
        # TODO(synk): this prefix slice may materialize one HBM copy for
        # misaligned sizes; a manual-DMA tail path inside the kernel would avoid it.
        body = lax.slice(d_flat, (0,), (n_body,))
        tail = lax.slice(d_flat, (n_body,), (n_elems,))
    else:
        body = d_flat
        tail = None

    rows = n_body // LANE                     # multiple of SUBLANE by construction
    d2 = body.reshape(rows, LANE)

    # Tile sizing: large HBM-streaming tiles; small inputs use one full-height
    # tile (rows is a multiple of 8, so the (8,128) constraint always holds).
    tile_rows = rows if rows <= MAX_TILE_ROWS else MAX_TILE_ROWS

    tiles_total = pl.cdiv(rows, tile_rows)
    num_splits = NUM_SPLITS if tiles_total >= NUM_SPLITS else 1
    tiles_per_split = pl.cdiv(tiles_total, num_splits)
    last_block = tiles_total - 1

    ragged_tail = (rows % tile_rows) != 0
    has_phantom = num_splits * tiles_per_split != tiles_total
    if ragged_tail:
        first_ragged_block = last_block       # last real block needs masking
    elif has_phantom:
        first_ragged_block = tiles_total      # only phantom blocks need masking
    else:
        first_ragged_block = None             # fully unmasked hot path

    def d_index_map(c, k):
        blk = c * tiles_per_split + k
        # Phantom blocks clamp to the previous block index -> Pallas elides the
        # re-DMA; their contribution is masked to zero inside the kernel.
        return (jnp.minimum(blk, last_block), 0)

    # VMEM budget: 2x double-buffered native input tile + f32 working headroom,
    # kept well under every generation's scoped/physical limits.
    in_bytes = tile_rows * LANE * d2.dtype.itemsize
    vmem_limit = int(min(32 * 1024 * 1024,
                         max(8 * 1024 * 1024,
                             2 * in_bytes + 2 * tile_rows * LANE * 4
                             + 2 * 1024 * 1024)))

    r2_arr = r2.reshape(1)

    parts = pl.pallas_call(
        functools.partial(_svdd_kernel,
                          n_rows=rows,
                          tile_rows=tile_rows,
                          tiles_per_split=tiles_per_split,
                          first_ragged_block=first_ragged_block),
        out_shape=jax.ShapeDtypeStruct((num_splits, 2, SUBLANE, LANE), jnp.float32),
        grid=(num_splits, tiles_per_split),
        in_specs=[
            pl.BlockSpec(memory_space=pltpu.MemorySpace.SMEM),    # radius^2
            pl.BlockSpec((tile_rows, LANE), d_index_map),         # distances tile
        ],
        out_specs=pl.BlockSpec((1, 2, SUBLANE, LANE), lambda c, k: (c, 0, 0, 0)),
        scratch_shapes=[
            pltpu.VMEM((SUBLANE, LANE), jnp.float32),             # sum partial
            pltpu.VMEM((SUBLANE, LANE), jnp.float32),             # hinge partial
        ],
        compiler_params=pltpu.CompilerParams(
            dimension_semantics=("parallel", "arbitrary"),
            vmem_limit_bytes=vmem_limit),
    )(r2_arr, d2)

    # O(1) combine of per-split partials + final scalar loss math.
    total_sum = jnp.sum(parts[:, 0])
    hinge_sum = jnp.sum(parts[:, 1])

    if tail is not None:
        t = tail.astype(jnp.float32)
        total_sum = total_sum + jnp.sum(t)
        hinge_sum = hinge_sum + jnp.sum(jnp.maximum(t - r2, 0.0))

    inv_n = jnp.float32(1.0 / n_elems)
    distance_loss = total_sum * inv_n
    radius_loss = r2 + jnp.float32(1.0 / nu) * (hinge_sum * inv_n)
    return radius_loss + distance_loss


def svdd_loss_ref(distances, radius, nu=0.1):
    """Pure-JAX reference mirroring the PyTorch forward."""
    d = distances.astype(jnp.float32)
    r2 = jnp.float32(radius) ** 2
    distance_loss = jnp.mean(d)
    radius_loss = r2 + (1.0 / nu) * jnp.mean(jnp.maximum(d - r2, 0.0))
    return radius_loss + distance_loss


if __name__ == "__main__":
    key = jax.random.PRNGKey(0)
    k_d, k_c = jax.random.split(key)

    # Deterministic synthetic "module parameters" (center is unused in forward).
    feat_dim = 32
    center = jax.random.normal(k_c, (feat_dim,), dtype=jnp.float32)  # unused, as in PyTorch forward
    radius = jnp.float32(0.5)   # nn.Parameter(radius) -> scalar parameter
    nu = 0.1

    # distances tensor (e.g. per-pixel anomaly distances), NCHW-like shape.
    distances = jax.random.uniform(k_d, (2, 4, 16, 16), dtype=jnp.float32) * 2.0

    # Force the kernel path even for this small test shape.
    out = svdd_loss(distances, radius, nu=nu, min_kernel_elems=0)
    out = jax.block_until_ready(out)

    ref = svdd_loss_ref(distances, radius, nu=nu)
    assert jnp.allclose(out, ref, rtol=1e-5, atol=1e-5), (out, ref)

    print("KERNEL_OK")
</pallas_src>

<mosaic_0001>
module attributes {stable_mosaic.version = 11 : i64} {
  func.func @_svdd_kernel(%arg0: i32, %arg1: i32, %arg2: memref<1xf32, #tpu.memory_space<smem>>, %arg3: memref<16x128xf32, #tpu.memory_space<vmem>>, %arg4: memref<1x2x8x128xf32, #tpu.memory_space<vmem>>, %arg5: memref<8x128xf32, #tpu.memory_space<vmem>>, %arg6: memref<8x128xf32, #tpu.memory_space<vmem>>) attributes {dimension_semantics = [#tpu.dimension_semantics<parallel>, #tpu.dimension_semantics<arbitrary>], iteration_bounds = array<i64: 1, 1>, scalar_prefetch = 0 : i64, scratch_operands = 2 : i64, tpu.core_type = #tpu.core_type<tc>, window_params = [{transform_indices = @transform_0, window_bounds = array<i64: 1>}, {transform_indices = @transform_1, window_bounds = array<i64: 16, 128>}, {transform_indices = @transform_2, window_bounds = array<i64: 1, 2, 8, 128>}]} {
    %c0_i32 = arith.constant 0 : i32
    %0 = arith.cmpi eq, %arg1, %c0_i32 : i32
    %1 = arith.extui %0 : i1 to i32
    %c0_i32_0 = arith.constant 0 : i32
    %2 = arith.cmpi ne, %1, %c0_i32_0 : i32
    scf.if %2 {
      %cst_15 = arith.constant 0.000000e+00 : f32
      %21 = vector.broadcast %cst_15 : f32 to vector<8x128xf32>
      %c0_16 = arith.constant 0 : index
      %c0_17 = arith.constant 0 : index
      %22 = vector.load %arg5[%c0_16, %c0_17] : memref<8x128xf32, #tpu.memory_space<vmem>>, vector<8x128xf32>
      tpu.vector_store %arg5[%c0_16, %c0_17], %21 {strides = array<i32>} : memref<8x128xf32, #tpu.memory_space<vmem>>, vector<8x128xf32>,
      %cst_18 = arith.constant 0.000000e+00 : f32
      %23 = vector.broadcast %cst_18 : f32 to vector<8x128xf32>
      %c0_19 = arith.constant 0 : index
      %c0_20 = arith.constant 0 : index
      %24 = vector.load %arg6[%c0_19, %c0_20] : memref<8x128xf32, #tpu.memory_space<vmem>>, vector<8x128xf32>
      tpu.vector_store %arg6[%c0_19, %c0_20], %23 {strides = array<i32>} : memref<8x128xf32, #tpu.memory_space<vmem>>, vector<8x128xf32>,
    } else {
    }
    %c0 = arith.constant 0 : index
    %3 = memref.load %arg2[%c0] : memref<1xf32, #tpu.memory_space<smem>>
    %c0_1 = arith.constant 0 : index
    %c0_2 = arith.constant 0 : index
    %4 = vector.load %arg3[%c0_1, %c0_2] : memref<16x128xf32, #tpu.memory_space<vmem>>, vector<16x128xf32>
    %5 = vector.shape_cast %4 : vector<16x128xf32> to vector<2x8x128xf32>
    %c0_3 = arith.constant 0 : index
    %c0_4 = arith.constant 0 : index
    %6 = vector.load %arg5[%c0_3, %c0_4] : memref<8x128xf32, #tpu.memory_space<vmem>>, vector<8x128xf32>
    %cst = arith.constant dense<0.000000e+00> : vector<8x128xf32>
    %7 = vector.multi_reduction <add>, %5, %cst [0] : vector<2x8x128xf32> to vector<8x128xf32>
    %8 = arith.addf %6, %7 : vector<8x128xf32>
    %c0_5 = arith.constant 0 : index
    %c0_6 = arith.constant 0 : index
    %9 = vector.load %arg5[%c0_5, %c0_6] : memref<8x128xf32, #tpu.memory_space<vmem>>, vector<8x128xf32>
    tpu.vector_store %arg5[%c0_5, %c0_6], %8 {strides = array<i32>} : memref<8x128xf32, #tpu.memory_space<vmem>>, vector<8x128xf32>,
    %c0_7 = arith.constant 0 : index
    %c0_8 = arith.constant 0 : index
    %10 = vector.load %arg6[%c0_7, %c0_8] : memref<8x128xf32, #tpu.memory_space<vmem>>, vector<8x128xf32>
    %11 = vector.broadcast %3 : f32 to vector<2x8x128xf32>
    %12 = arith.subf %5, %11 : vector<2x8x128xf32>
    %cst_9 = arith.constant 0.000000e+00 : f32
    %13 = vector.broadcast %cst_9 : f32 to vector<2x8x128xf32>
    %14 = arith.maximumf %12, %13 : vector<2x8x128xf32>
    %cst_10 = arith.constant dense<0.000000e+00> : vector<8x128xf32>
    %15 = vector.multi_reduction <add>, %14, %cst_10 [0] : vector<2x8x128xf32> to vector<8x128xf32>
    %16 = arith.addf %10, %15 : vector<8x128xf32>
    %c0_11 = arith.constant 0 : index
    %c0_12 = arith.constant 0 : index
    %17 = vector.load %arg6[%c0_11, %c0_12] : memref<8x128xf32, #tpu.memory_space<vmem>>, vector<8x128xf32>
    tpu.vector_store %arg6[%c0_11, %c0_12], %16 {strides = array<i32>} : memref<8x128xf32, #tpu.memory_space<vmem>>, vector<8x128xf32>,
    %c0_i32_13 = arith.constant 0 : i32
    %18 = arith.cmpi eq, %arg1, %c0_i32_13 : i32
    %19 = arith.extui %18 : i1 to i32
    %c0_i32_14 = arith.constant 0 : i32
    %20 = arith.cmpi ne, %19, %c0_i32_14 : i32
    scf.if %20 {
      %c0_15 = arith.constant 0 : index
      %c0_16 = arith.constant 0 : index
      %21 = vector.load %arg5[%c0_15, %c0_16] : memref<8x128xf32, #tpu.memory_space<vmem>>, vector<8x128xf32>
      %c0_17 = arith.constant 0 : index
      %c0_18 = arith.constant 0 : index
      %c0_19 = arith.constant 0 : index
      %c0_20 = arith.constant 0 : index
      %22 = vector.load %arg4[%c0_17, %c0_18, %c0_19, %c0_20] : memref<1x2x8x128xf32, #tpu.memory_space<vmem>>, vector<1x1x8x128xf32>
      %23 = vector.shape_cast %22 : vector<1x1x8x128xf32> to vector<8x128xf32>
      %24 = vector.shape_cast %21 : vector<8x128xf32> to vector<1x1x8x128xf32>
      tpu.vector_store %arg4[%c0_17, %c0_18, %c0_19, %c0_20], %24 {strides = array<i32>} : memref<1x2x8x128xf32, #tpu.memory_space<vmem>>, vector<1x1x8x128xf32>,
      %c0_21 = arith.constant 0 : index
      %c0_22 = arith.constant 0 : index
      %25 = vector.load %arg6[%c0_21, %c0_22] : memref<8x128xf32, #tpu.memory_space<vmem>>, vector<8x128xf32>
      %c0_23 = arith.constant 0 : index
      %c1 = arith.constant 1 : index
      %c0_24 = arith.constant 0 : index
      %c0_25 = arith.constant 0 : index
      %26 = vector.load %arg4[%c0_23, %c1, %c0_24, %c0_25] : memref<1x2x8x128xf32, #tpu.memory_space<vmem>>, vector<1x1x8x128xf32>
      %27 = vector.shape_cast %26 : vector<1x1x8x128xf32> to vector<8x128xf32>
      %28 = vector.shape_cast %25 : vector<8x128xf32> to vector<1x1x8x128xf32>
      tpu.vector_store %arg4[%c0_23, %c1, %c0_24, %c0_25], %28 {strides = array<i32>} : memref<1x2x8x128xf32, #tpu.memory_space<vmem>>, vector<1x1x8x128xf32>,
    } else {
    }
    return
  }
  func.func @transform_0(%arg0: i32, %arg1: i32) -> i32 {
    %c0_i32 = arith.constant 0 : i32
    %c0_i32_0 = arith.constant 0 : i32
    return %c0_i32 : i32
  }
  func.func @transform_1(%arg0: i32, %arg1: i32) -> (i32, i32) {
    %c1_i32 = arith.constant 1 : i32
    %0 = arith.muli %arg0, %c1_i32 : i32
    %1 = arith.addi %0, %arg1 : i32
    %c0_i32 = arith.constant 0 : i32
    %2 = arith.minsi %1, %c0_i32 : i32
    %c0_i32_0 = arith.constant 0 : i32
    %c0_i32_1 = arith.constant 0 : i32
    return %2, %c0_i32_0 : i32, i32
  }
  func.func @transform_2(%arg0: i32, %arg1: i32) -> (i32, i32, i32, i32) {
    %c0_i32 = arith.constant 0 : i32
    %c0_i32_0 = arith.constant 0 : i32
    %c0_i32_1 = arith.constant 0 : i32
    %c0_i32_2 = arith.constant 0 : i32
    return %arg0, %c0_i32, %c0_i32_0, %c0_i32_1 : i32, i32, i32, i32
  }
}

</mosaic_0001>

<llo_original>
// kernel: tpu_custom_call.1
$region0: #{tpu_custom_call.1}
  #allocation0 [shape = 'u32[]', space=smem, size = 0x4, offset = 0x4, fixed_abs, tag = 'smem constant byte address 0x4 - core index']
  #allocation1 [shape = 'u32[72,128]{1,0:T(1,128)}', space=vmem, size = 0x9000, scoped, tag = 'internal scratch']
  #allocation2 [shape = 'f32[8,128]{1,0:T(8,128)}', space=vmem, size = 0x1000, scoped, tag = 'scratch operand']
  #allocation3 [shape = 'f32[8,128]{1,0:T(8,128)}', space=vmem, size = 0x1000, scoped, tag = 'scratch operand']
  #allocation4 [shape = 'f32[1]{0:T(128)S(6)}', space=smem, size = 0x200, scoped, tag = 'scoped memory for tpu_custom_call.1']
  %s0 = inlined_call_operand.<no memory space> [shape: f32[1], index: 0, kind: input, shape index: {}]
  %s1 = inlined_call_operand.hbm [shape: f32[16,128], index: 1, kind: input, shape index: {}]
  %s2 = inlined_call_operand.hbm [shape: f32[1,2,8,128], index: 2, kind: output, shape index: {}]
  %s3 = sld [smem:[#allocation0]]
  $region30: #{tpu_custom_call.1} parent=0
    _
  %s5 = ssub.s32 1, %s3
  %s6 = scalar_select 0, %s5, %s3
  %7 = sst [smem:[#allocation4]] %s0
  $region1: #{tpu_custom_call.1} parent=0
    #allocation5 [shape = 'u8[8192]{0}', space=vmem, size = 0x2000, scoped, tag = 'input window, operand 1, single buffered']
    #allocation6 [shape = 's32[1]{0}', space=sflag, size = 0x4, scoped, tag = 'scoped memory for tpu_custom_call.1']
    #allocation7 [shape = 's32[1]{0}', space=sflag, size = 0x4, scoped, tag = 'scoped memory for tpu_custom_call.1']
    #allocation8 [shape = 'u8[8192]{0}', space=vmem, size = 0x2000, scoped, tag = 'output window, operand 0, single buffered']
    %8 = vsyncpa [#allocation6], 0
    %9 = vsyncpa [#allocation7], 0
    // Predicated region
    $region2: #{tpu_custom_call.1} parent=1 // pred_check
      _
    $region3: #{tpu_custom_call.1} parent=1 // pred_check_branch
      %11 = sbr.rel (0) target = $region5
    $region4: #{tpu_custom_call.1} parent=1 // pred_region
      _
    $region5: #{tpu_custom_call.1} parent=1 // pred_fallthru
      _
    // Predicated region
    $region6: #{tpu_custom_call.1} parent=1 // pred_check
      _
    $region7: #{tpu_custom_call.1} parent=1 // pred_check_branch
      %13 = sbr.rel (0) target = $region9
    $region8: #{tpu_custom_call.1} parent=1 // pred_region
      %s14 = sadd.s32 0, 0
      %p15 = scmp.lt.s32.totalorder %s14, 0
      %s16 = scalar_select %p15, %s14, 0
      %s17 = smul.u32 2, %s16
      %19 = vsyncadd [#allocation6], 0
      %s20 = smul.addr %s17, 8
      %s21 = scalar_lea.hbm %s1, %s20
      %s22 = sshll.u32 %s21, 4
      %s23 = int_to_ptr.hbm [resolvable:$true] %s22
      %s24 = sshll.u32 [#allocation5], 4
      %s25 = int_to_ptr.vmem [resolvable:$true] %s24
      %30 = dma.hbm_to_vmem [thread:$0]  %s23, 256, %s25, [#allocation6], 128, 128, 8
    $region9: #{tpu_custom_call.1} parent=1 // pred_fallthru
      _
    // Predicated region
    $region10: #{tpu_custom_call.1} parent=1 // pred_check
      _
    $region11: #{tpu_custom_call.1} parent=1 // pred_check_branch
      %32 = sbr.rel (0) target = $region13
    $region12: #{tpu_custom_call.1} parent=1 // pred_region
      %34 = dma.done [#allocation6], 256
    $region13: #{tpu_custom_call.1} parent=1 // pred_fallthru
      _
    %s35 = sadd.s32 0, 0
    %p36 = scmp.lt.s32.totalorder %s35, 0
    %s37 = scalar_select %p36, %s35, 0
    %s38 = smul.u32 2, %s37
    %p39 = scmp.eq.s32.totalorder 0, 0
    // Predicated region
    $region14: #{tpu_custom_call.1} parent=1 // pred_check
      %p40 = pneg %p39
    $region15: #{tpu_custom_call.1} parent=1 // pred_check_branch
      %42 = sbr.rel (%p40) target = $region17
    $region16: #{tpu_custom_call.1} parent=1 // pred_region
      %43 = vst [vmem:[#allocation2] sm:$0xff] 0.0
      %44 = vst [vmem:[#allocation3] sm:$0xff] 0.0
    $region17: #{tpu_custom_call.1} parent=1 // pred_fallthru
      _
    %s45 = sld [smem:[#allocation4]]
    %v46 = vld [vmem:[#allocation5] sm:$0xff]
    %v47 = vld [vmem:[#allocation5 + $0x8] sm:$0xff]
    %v48 = vld [vmem:[#allocation2] sm:$0xff]
    %v49 = vadd.f32 %v46, %v47
    %v50 = vadd.f32 %v48, %v49
    %51 = vst [vmem:[#allocation2] sm:$0xff] %v50
    %v52 = vld [vmem:[#allocation3] sm:$0xff]
    %v53 = vstv %s45
    %v54 = vsub.f32 %v46, %v53
    %v55 = vsub.f32 %v47, %v53
    %v56 = vmax.f32 %v54, 0.0
    %v57 = vmax.f32 %v55, 0.0
    %v58 = vadd.f32 %v56, %v57
    %v59 = vadd.f32 %v52, %v58
    %60 = vst [vmem:[#allocation3] sm:$0xff] %v59
    // Predicated region
    $region18: #{tpu_custom_call.1} parent=1 // pred_check
      %p61 = pneg %p39
    $region19: #{tpu_custom_call.1} parent=1 // pred_check_branch
      %63 = sbr.rel (%p61) target = $region21
    $region20: #{tpu_custom_call.1} parent=1 // pred_region
      %v64 = vld [vmem:[#allocation2] sm:$0xff]
      %65 = vst [vmem:[#allocation8] sm:$0xff] %v64
      %v66 = vld [vmem:[#allocation3] sm:$0xff]
      %s67 = scalar_lea.vmem [#allocation8], 8
      %68 = vst [vmem:[%s67] sm:$0xff] %v66
    $region21: #{tpu_custom_call.1} parent=1 // pred_fallthru
      _
    // Predicated region
    $region22: #{tpu_custom_call.1} parent=1 // pred_check
      _
    $region23: #{tpu_custom_call.1} parent=1 // pred_check_branch
      %70 = sbr.rel (0) target = $region25
    $region24: #{tpu_custom_call.1} parent=1 // pred_region
      %72 = vsyncadd [#allocation7], 0
      %s73 = sshll.u32 [#allocation8], 4
      %s74 = int_to_ptr.vmem [resolvable:$true] %s73
      %s75 = sshll.u32 %s2, 4
      %s76 = int_to_ptr.hbm [resolvable:$true] %s75
      %81 = dma.vmem_to_hbm [thread:$0]  %s74, 256, %s76, [#allocation7], 128, 128, 8
    $region25: #{tpu_custom_call.1} parent=1 // pred_fallthru
      _
    // Predicated region
    $region26: #{tpu_custom_call.1} parent=1 // pred_check
      _
    $region27: #{tpu_custom_call.1} parent=1 // pred_check_branch
      %83 = sbr.rel (0) target = $region29
    $region28: #{tpu_custom_call.1} parent=1 // pred_region
      %85 = dma.done [#allocation7], 256
    $region29: #{tpu_custom_call.1} parent=1 // pred_fallthru
      _
    %86 = vsyncpa [#allocation6], 1
    %87 = vsyncpa [#allocation7], 1

</llo_original>
